<compile_context>
chip_gen: v6e
topology: v6e:2x2x1
jax: 0.10.0
libtpu: 0.0.40
codegen_flags: <defaults>
</compile_context>

<pallas_src>
import functools

import jax
import jax.numpy as jnp
from jax.experimental import pallas as pl
from jax.experimental.pallas import tpu as pltpu


def _dyrelu2_kernel(x_ref, w1_ref, b1_ref, w2_ref, b2_ref, o_ref,
                    *, oup, lambda_a, init_a, init_b, inv_hw):
    x = x_ref[...]                                  # (1, C, HW) f32, one image

    # AdaptiveAvgPool2d(1): sum over the lane axis, scale by 1/HW.
    y = jnp.sum(x, axis=-1) * inv_hw                # (1, C)

    # fc = Linear(inp, squeeze) -> ReLU -> Linear(squeeze, oup*4) -> h_sigmoid.
    # Tiny per-image matmuls, executed once per grid step (not per spatial tile).
    h = jnp.dot(y, w1_ref[...], preferred_element_type=jnp.float32) + b1_ref[...]
    h = jnp.maximum(h, 0.0)                         # (1, squeeze)
    z = jnp.dot(h, w2_ref[...], preferred_element_type=jnp.float32) + b2_ref[...]
    # h_sigmoid: relu6(z + 3) * h_max / 6, h_max = 1
    z = jnp.clip(z + 3.0, 0.0, 6.0) * (1.0 / 6.0)   # (1, 4*oup)

    # split into a1, b1, a2, b2 along channel dim (same order as torch.split),
    # computed once per image and broadcast once over the spatial (lane) axis.
    a1 = (z[:, 0 * oup:1 * oup] - 0.5) * lambda_a + init_a[0]
    bb1 = z[:, 1 * oup:2 * oup] - 0.5 + init_b[0]
    a2 = (z[:, 2 * oup:3 * oup] - 0.5) * lambda_a + init_a[1]
    bb2 = z[:, 3 * oup:4 * oup] - 0.5 + init_b[1]

    o1 = x * a1[:, :, None] + bb1[:, :, None]
    o2 = x * a2[:, :, None] + bb2[:, :, None]
    o_ref[...] = jnp.maximum(o1, o2)


def prepare_params(w1, b1, w2, b2):
    """One-time parameter prep (pre-transposed nn.Linear weights). Hoisted out
    of the per-call wrapper so no small transpose/reshape ops sit on the
    critical path of each forward call."""
    w1_t = jnp.asarray(w1, jnp.float32).T           # (inp, squeeze)
    w2_t = jnp.asarray(w2, jnp.float32).T           # (squeeze, oup*exp)
    b1_r = jnp.asarray(b1, jnp.float32).reshape(1, -1)
    b2_r = jnp.asarray(b2, jnp.float32).reshape(1, -1)
    return w1_t, b1_r, w2_t, b2_r


def dyrelu2_forward(x_nchw, w1_t, b1_r, w2_t, b2_r, *,
                    oup, lambda_a, init_a, init_b):
    """x_nchw: (B, C, H, W) float32.  w1_t/b1_r/w2_t/b2_r from prepare_params."""
    B, C, H, W = x_nchw.shape
    HW = H * W
    x = x_nchw.reshape(B, C, HW).astype(jnp.float32)

    squeeze = w1_t.shape[1]
    exp_oup = w2_t.shape[1]

    kernel = functools.partial(
        _dyrelu2_kernel, oup=oup, lambda_a=float(lambda_a),
        init_a=tuple(float(v) for v in init_a),
        init_b=tuple(float(v) for v in init_b),
        inv_hw=1.0 / HW)

    # Advisory cost for XLA scheduling: the op is HBM-streaming bound.
    param_bytes = 4 * (w1_t.size + b1_r.size + w2_t.size + b2_r.size)
    cost = pl.CostEstimate(
        flops=int(6 * B * C * HW + 2 * B * (C * squeeze + squeeze * exp_oup)),
        transcendentals=0,
        bytes_accessed=int(2 * B * C * HW * 4 + param_bytes))

    # VMEM budget: 2x double-buffered (x block + out block) + resident weights.
    # Clamp to 32 MiB so the setting is safe on v7x (64 MiB physical VMEM) as
    # well as v5e/v6e (128 MiB).
    block_bytes = C * HW * 4
    vmem_needed = 4 * block_bytes + param_bytes + (1 << 20)
    vmem_limit = int(min(max(vmem_needed, 16 << 20), 32 << 20))

    grid_spec = pltpu.PrefetchScalarGridSpec(
        num_scalar_prefetch=0,
        grid=(B,),
        in_specs=[
            # One full image slab per grid step: lane-dense (HW multiple of
            # 128), full C extent -> unmasked loads/stores, auto double-buffer.
            pl.BlockSpec((1, C, HW), lambda b: (b, 0, 0)),
            # Weights/biases: constant block index -> DMA'd once, VMEM-resident.
            pl.BlockSpec(w1_t.shape, lambda b: (0, 0)),
            pl.BlockSpec(b1_r.shape, lambda b: (0, 0)),
            pl.BlockSpec(w2_t.shape, lambda b: (0, 0)),
            pl.BlockSpec(b2_r.shape, lambda b: (0, 0)),
        ],
        out_specs=pl.BlockSpec((1, C, HW), lambda b: (b, 0, 0)),
    )

    out = pl.pallas_call(
        kernel,
        out_shape=jax.ShapeDtypeStruct((B, C, HW), jnp.float32),
        grid_spec=grid_spec,
        compiler_params=pltpu.CompilerParams(
            dimension_semantics=("parallel",),   # megacore sharding on v7x
            vmem_limit_bytes=vmem_limit),
        cost_estimate=cost,
    )(x, w1_t, b1_r, w2_t, b2_r)

    return out.reshape(B, C, H, W)


def _reference_jax(x_nchw, w1, b1, w2, b2, *, oup, lambda_a, init_a, init_b):
    y = jnp.mean(x_nchw, axis=(2, 3))                       # (B, C)
    h = jnp.maximum(y @ w1.T + b1, 0.0)
    z = h @ w2.T + b2
    z = jnp.clip(z + 3.0, 0.0, 6.0) / 6.0
    a1 = (z[:, 0 * oup:1 * oup] - 0.5) * lambda_a + init_a[0]
    bb1 = z[:, 1 * oup:2 * oup] - 0.5 + init_b[0]
    a2 = (z[:, 2 * oup:3 * oup] - 0.5) * lambda_a + init_a[1]
    bb2 = z[:, 3 * oup:4 * oup] - 0.5 + init_b[1]
    a1 = a1[:, :, None, None]; bb1 = bb1[:, :, None, None]
    a2 = a2[:, :, None, None]; bb2 = bb2[:, :, None, None]
    return jnp.maximum(x_nchw * a1 + bb1, x_nchw * a2 + bb2)


if __name__ == "__main__":
    # Module config matching DYReLU2 defaults: K2=True, use_bias=True -> exp=4
    B, C, H, W = 2, 8, 16, 16
    inp = oup = C
    reduction = 4
    squeeze = inp // reduction                      # reduction == 4 branch
    exp = 4
    lambda_a = 1.0 * 2                              # self.lambda_a = lambda_a * 2
    init_a = (1.0, 0.0)
    init_b = (0.0, 0.0)

    key = jax.random.PRNGKey(0)
    kx, k1, k2, k3, k4 = jax.random.split(key, 5)
    x = jax.random.normal(kx, (B, C, H, W), dtype=jnp.float32)
    # deterministic synthetic Linear parameters (nn.Linear shapes)
    w1 = jax.random.normal(k1, (squeeze, inp), dtype=jnp.float32) * 0.1
    b1 = jax.random.normal(k2, (squeeze,), dtype=jnp.float32) * 0.1
    w2 = jax.random.normal(k3, (oup * exp, squeeze), dtype=jnp.float32) * 0.1
    b2 = jax.random.normal(k4, (oup * exp,), dtype=jnp.float32) * 0.1

    w1_t, b1_r, w2_t, b2_r = prepare_params(w1, b1, w2, b2)

    out = dyrelu2_forward(x, w1_t, b1_r, w2_t, b2_r, oup=oup,
                          lambda_a=lambda_a, init_a=init_a, init_b=init_b)
    out = jax.block_until_ready(out)

    ref = _reference_jax(x, w1, b1, w2, b2, oup=oup, lambda_a=lambda_a,
                         init_a=init_a, init_b=init_b)
    assert out.shape == (B, C, H, W)
    assert jnp.allclose(out, ref, atol=1e-5, rtol=1e-5), "mismatch vs reference"
    print("KERNEL_OK")
</pallas_src>

<mosaic_0001>
module attributes {stable_mosaic.version = 11 : i64} {
  func.func @_dyrelu2_kernel(%arg0: i32, %arg1: memref<1x8x256xf32, #tpu.memory_space<vmem>>, %arg2: memref<8x2xf32, #tpu.memory_space<vmem>>, %arg3: memref<1x2xf32, #tpu.memory_space<vmem>>, %arg4: memref<2x32xf32, #tpu.memory_space<vmem>>, %arg5: memref<1x32xf32, #tpu.memory_space<vmem>>, %arg6: memref<1x8x256xf32, #tpu.memory_space<vmem>>) attributes {dimension_semantics = [#tpu.dimension_semantics<parallel>], iteration_bounds = array<i64: 2>, scalar_prefetch = 0 : i64, scratch_operands = 0 : i64, tpu.core_type = #tpu.core_type<tc>, window_params = [{transform_indices = @transform_0, window_bounds = array<i64: 1, 8, 256>}, {pipeline_mode = #tpu.pipeline_mode<synchronous>, transform_indices = @transform_1, window_bounds = array<i64: 8, 2>}, {pipeline_mode = #tpu.pipeline_mode<synchronous>, transform_indices = @transform_2, window_bounds = array<i64: 1, 2>}, {pipeline_mode = #tpu.pipeline_mode<synchronous>, transform_indices = @transform_3, window_bounds = array<i64: 2, 32>}, {pipeline_mode = #tpu.pipeline_mode<synchronous>, transform_indices = @transform_4, window_bounds = array<i64: 1, 32>}, {transform_indices = @transform_5, window_bounds = array<i64: 1, 8, 256>}]} {
    %c0 = arith.constant 0 : index
    %c0_0 = arith.constant 0 : index
    %c0_1 = arith.constant 0 : index
    %0 = vector.load %arg1[%c0, %c0_0, %c0_1] : memref<1x8x256xf32, #tpu.memory_space<vmem>>, vector<1x8x256xf32>
    %cst = arith.constant dense<0.000000e+00> : vector<1x8xf32>
    %1 = vector.multi_reduction <add>, %0, %cst [2] : vector<1x8x256xf32> to vector<1x8xf32>
    %cst_2 = arith.constant 3.906250e-03 : f32
    %2 = vector.broadcast %cst_2 : f32 to vector<1x8xf32>
    %3 = arith.mulf %1, %2 : vector<1x8xf32>
    %c0_3 = arith.constant 0 : index
    %c0_4 = arith.constant 0 : index
    %4 = vector.load %arg2[%c0_3, %c0_4] : memref<8x2xf32, #tpu.memory_space<vmem>>, vector<8x2xf32>
    %cst_5 = arith.constant dense<0.000000e+00> : vector<1x2xf32>
    %5 = tpu.matmul %3, %4, %cst_5 {dimension_numbers = #tpu.dot_dimension_numbers<[1], [0], [0], [1], [0, 0, 1, 1], [], []>} : vector<1x8xf32>, vector<8x2xf32>, vector<1x2xf32> -> vector<1x2xf32>
    %c0_6 = arith.constant 0 : index
    %c0_7 = arith.constant 0 : index
    %6 = vector.load %arg3[%c0_6, %c0_7] : memref<1x2xf32, #tpu.memory_space<vmem>>, vector<1x2xf32>
    %7 = arith.addf %5, %6 : vector<1x2xf32>
    %cst_8 = arith.constant 0.000000e+00 : f32
    %8 = vector.broadcast %cst_8 : f32 to vector<1x2xf32>
    %9 = arith.maximumf %7, %8 : vector<1x2xf32>
    %c0_9 = arith.constant 0 : index
    %c0_10 = arith.constant 0 : index
    %10 = vector.load %arg4[%c0_9, %c0_10] : memref<2x32xf32, #tpu.memory_space<vmem>>, vector<2x32xf32>
    %cst_11 = arith.constant dense<0.000000e+00> : vector<1x32xf32>
    %11 = tpu.matmul %9, %10, %cst_11 {dimension_numbers = #tpu.dot_dimension_numbers<[1], [0], [0], [1], [0, 0, 1, 1], [], []>} : vector<1x2xf32>, vector<2x32xf32>, vector<1x32xf32> -> vector<1x32xf32>
    %c0_12 = arith.constant 0 : index
    %c0_13 = arith.constant 0 : index
    %12 = vector.load %arg5[%c0_12, %c0_13] : memref<1x32xf32, #tpu.memory_space<vmem>>, vector<1x32xf32>
    %13 = arith.addf %11, %12 : vector<1x32xf32>
    %cst_14 = arith.constant 3.000000e+00 : f32
    %14 = vector.broadcast %cst_14 : f32 to vector<1x32xf32>
    %15 = arith.addf %13, %14 : vector<1x32xf32>
    %cst_15 = arith.constant 0.000000e+00 : f32
    %cst_16 = arith.constant 6.000000e+00 : f32
    %16 = vector.broadcast %cst_15 : f32 to vector<1x32xf32>
    %17 = arith.maximumf %16, %15 : vector<1x32xf32>
    %18 = vector.broadcast %cst_16 : f32 to vector<1x32xf32>
    %19 = arith.minimumf %18, %17 : vector<1x32xf32>
    %cst_17 = arith.constant 0.166666672 : f32
    %20 = vector.broadcast %cst_17 : f32 to vector<1x32xf32>
    %21 = arith.mulf %19, %20 : vector<1x32xf32>
    %22 = vector.extract_strided_slice %21 {offsets = [0, 0], sizes = [1, 8], strides = [1, 1]} : vector<1x32xf32> to vector<1x8xf32>
    %cst_18 = arith.constant 5.000000e-01 : f32
    %23 = vector.broadcast %cst_18 : f32 to vector<1x8xf32>
    %24 = arith.subf %22, %23 : vector<1x8xf32>
    %cst_19 = arith.constant 2.000000e+00 : f32
    %25 = vector.broadcast %cst_19 : f32 to vector<1x8xf32>
    %26 = arith.mulf %24, %25 : vector<1x8xf32>
    %cst_20 = arith.constant 1.000000e+00 : f32
    %27 = vector.broadcast %cst_20 : f32 to vector<1x8xf32>
    %28 = arith.addf %26, %27 : vector<1x8xf32>
    %29 = vector.extract_strided_slice %21 {offsets = [0, 8], sizes = [1, 8], strides = [1, 1]} : vector<1x32xf32> to vector<1x8xf32>
    %cst_21 = arith.constant 5.000000e-01 : f32
    %30 = vector.broadcast %cst_21 : f32 to vector<1x8xf32>
    %31 = arith.subf %29, %30 : vector<1x8xf32>
    %cst_22 = arith.constant 0.000000e+00 : f32
    %32 = vector.broadcast %cst_22 : f32 to vector<1x8xf32>
    %33 = arith.addf %31, %32 : vector<1x8xf32>
    %34 = vector.extract_strided_slice %21 {offsets = [0, 16], sizes = [1, 8], strides = [1, 1]} : vector<1x32xf32> to vector<1x8xf32>
    %cst_23 = arith.constant 5.000000e-01 : f32
    %35 = vector.broadcast %cst_23 : f32 to vector<1x8xf32>
    %36 = arith.subf %34, %35 : vector<1x8xf32>
    %cst_24 = arith.constant 2.000000e+00 : f32
    %37 = vector.broadcast %cst_24 : f32 to vector<1x8xf32>
    %38 = arith.mulf %36, %37 : vector<1x8xf32>
    %cst_25 = arith.constant 0.000000e+00 : f32
    %39 = vector.broadcast %cst_25 : f32 to vector<1x8xf32>
    %40 = arith.addf %38, %39 : vector<1x8xf32>
    %41 = vector.extract_strided_slice %21 {offsets = [0, 24], sizes = [1, 8], strides = [1, 1]} : vector<1x32xf32> to vector<1x8xf32>
    %cst_26 = arith.constant 5.000000e-01 : f32
    %42 = vector.broadcast %cst_26 : f32 to vector<1x8xf32>
    %43 = arith.subf %41, %42 : vector<1x8xf32>
    %cst_27 = arith.constant 0.000000e+00 : f32
    %44 = vector.broadcast %cst_27 : f32 to vector<1x8xf32>
    %45 = arith.addf %43, %44 : vector<1x8xf32>
    %46 = vector.shape_cast %28 : vector<1x8xf32> to vector<1x8x1xf32>
    %47 = vector.broadcast %46 : vector<1x8x1xf32> to vector<1x8x256xf32>
    %48 = arith.mulf %0, %47 : vector<1x8x256xf32>
    %49 = vector.shape_cast %33 : vector<1x8xf32> to vector<1x8x1xf32>
    %50 = vector.broadcast %49 : vector<1x8x1xf32> to vector<1x8x256xf32>
    %51 = arith.addf %48, %50 : vector<1x8x256xf32>
    %52 = vector.shape_cast %40 : vector<1x8xf32> to vector<1x8x1xf32>
    %53 = vector.broadcast %52 : vector<1x8x1xf32> to vector<1x8x256xf32>
    %54 = arith.mulf %0, %53 : vector<1x8x256xf32>
    %55 = vector.shape_cast %45 : vector<1x8xf32> to vector<1x8x1xf32>
    %56 = vector.broadcast %55 : vector<1x8x1xf32> to vector<1x8x256xf32>
    %57 = arith.addf %54, %56 : vector<1x8x256xf32>
    %58 = arith.maximumf %51, %57 : vector<1x8x256xf32>
    %c0_28 = arith.constant 0 : index
    %c0_29 = arith.constant 0 : index
    %c0_30 = arith.constant 0 : index
    %59 = vector.load %arg6[%c0_28, %c0_29, %c0_30] : memref<1x8x256xf32, #tpu.memory_space<vmem>>, vector<1x8x256xf32>
    tpu.vector_store %arg6[%c0_28, %c0_29, %c0_30], %58 {strides = array<i32>} : memref<1x8x256xf32, #tpu.memory_space<vmem>>, vector<1x8x256xf32>,
    return
  }
  func.func @transform_0(%arg0: i32) -> (i32, i32, i32) {
    %c0_i32 = arith.constant 0 : i32
    %c0_i32_0 = arith.constant 0 : i32
    %c0_i32_1 = arith.constant 0 : i32
    return %arg0, %c0_i32, %c0_i32_0 : i32, i32, i32
  }
  func.func @transform_1(%arg0: i32) -> (i32, i32) {
    %c0_i32 = arith.constant 0 : i32
    %c0_i32_0 = arith.constant 0 : i32
    %c0_i32_1 = arith.constant 0 : i32
    return %c0_i32, %c0_i32_0 : i32, i32
  }
  func.func @transform_2(%arg0: i32) -> (i32, i32) {
    %c0_i32 = arith.constant 0 : i32
    %c0_i32_0 = arith.constant 0 : i32
    %c0_i32_1 = arith.constant 0 : i32
    return %c0_i32, %c0_i32_0 : i32, i32
  }
  func.func @transform_3(%arg0: i32) -> (i32, i32) {
    %c0_i32 = arith.constant 0 : i32
    %c0_i32_0 = arith.constant 0 : i32
    %c0_i32_1 = arith.constant 0 : i32
    return %c0_i32, %c0_i32_0 : i32, i32
  }
  func.func @transform_4(%arg0: i32) -> (i32, i32) {
    %c0_i32 = arith.constant 0 : i32
    %c0_i32_0 = arith.constant 0 : i32
    %c0_i32_1 = arith.constant 0 : i32
    return %c0_i32, %c0_i32_0 : i32, i32
  }
  func.func @transform_5(%arg0: i32) -> (i32, i32, i32) {
    %c0_i32 = arith.constant 0 : i32
    %c0_i32_0 = arith.constant 0 : i32
    %c0_i32_1 = arith.constant 0 : i32
    return %arg0, %c0_i32, %c0_i32_0 : i32, i32, i32
  }
}

</mosaic_0001>

<llo_original>
// kernel: tpu_custom_call.1
$region0: #{tpu_custom_call.1}
  #allocation0 [shape = 'u32[]', space=smem, size = 0x4, offset = 0x4, fixed_abs, tag = 'smem constant byte address 0x4 - core index']
  #allocation1 [shape = 'u32[144,128]{1,0:T(1,128)}', space=vmem, size = 0x12000, scoped, tag = 'internal scratch']
  %s0 = inlined_call_operand.hbm [shape: f32[2,8,256], index: 0, kind: input, shape index: {}]
  %s1 = inlined_call_operand.vmem [shape: f32[8,2], index: 1, kind: input, shape index: {}]
  %s2 = inlined_call_operand.vmem [shape: f32[1,2], index: 2, kind: input, shape index: {}]
  %s3 = inlined_call_operand.vmem [shape: f32[2,32], index: 3, kind: input, shape index: {}]
  %s4 = inlined_call_operand.vmem [shape: f32[1,32], index: 4, kind: input, shape index: {}]
  %s5 = inlined_call_operand.hbm [shape: f32[2,8,256], index: 5, kind: output, shape index: {}]
  %s6 = sld [smem:[#allocation0]]
  $region57: #{tpu_custom_call.1} parent=0
    _
  %s8 = ssub.s32 1, %s6
  %s9 = scalar_select 0, %s8, %s6
  $region1: #{tpu_custom_call.1} parent=0
    #allocation2 [shape = 'u8[16384]{0}', space=vmem, size = 0x4000, scoped, tag = 'input window, operand 0']
    #allocation3 [shape = 's32[2]{0}', space=sflag, size = 0x8, scoped, tag = 'scoped memory for tpu_custom_call.1']
    #allocation4 [shape = 's32[2]{0}', space=sflag, size = 0x8, scoped, tag = 'scoped memory for tpu_custom_call.1']
    #allocation5 [shape = 'u8[16384]{0}', space=vmem, size = 0x4000, scoped, tag = 'output window, operand 0']
    %10 = vsyncpa [#allocation3], 0
    %s11 = scalar_lea.sflag [#allocation3], 1
    %12 = vsyncpa %s11, 0
    %13 = vsyncpa [#allocation4], 0
    %s14 = scalar_lea.sflag [#allocation4], 1
    %15 = vsyncpa %s14, 0
    loop: start=0, step=1, limit=4
    $region2: #{tpu_custom_call.1} parent=1 // loop_pre_header
      _
    $region3: #{tpu_custom_call.1} parent=1 // loop_header
      %s17 = sphi 0, %s21
      %p18 = scmp.ge.s32.totalorder %s17, 4
      %s27 = sphi 0, %s29
      %s30 = sphi 0, %s27
      %s31 = sphi 0, %s30
      %s47 = sphi 0, %s31
      %s51 = sphi 0, %s51
      %s53 = sphi 0, %s51
      %s54 = sphi 0, %s53
      %s68 = sphi 0, %s54
      %s72 = sphi 0, %s72
      %s74 = sphi 0, %s72
      %s75 = sphi 0, %s74
      %s89 = sphi 0, %s75
      %s93 = sphi 0, %s93
      %s95 = sphi 0, %s93
      %s96 = sphi 0, %s95
      %s110 = sphi 0, %s96
      %s114 = sphi 0, %s114
      %s116 = sphi 0, %s114
      %s117 = sphi 0, %s116
      %s131 = sphi 0, %s117
      %s137 = sphi 0, %s139
      %s140 = sphi 0, %s137
      %s141 = sphi 0, %s140
      %s157 = sphi 0, %s141
    $region4: #{tpu_custom_call.1} parent=1 // loop_header_branch
      %20 = sbr.rel (%p18) target = $region8
    $region5: #{tpu_custom_call.1} parent=1 // loop_body
      %s22 = ssub.s32 %s17, 1
      %s23 = ssub.s32 %s17, 2
      %s24 = sadd.s32 %s17, 1
      %s25 = ssub.s32 %s17, %s24
      %p26 = scmp.eq.s32.totalorder %s25, 0
      %s28 = sadd.s32 %s27, 1
      %s29 = scalar_select %p26, %s27, %s28
      %p32 = pneg %p26
      %p33 = scmp.eq.s32.totalorder %s17, 1
      %p34 = por %p32, %p33
      %p35 = scmp.ne.s32.totalorder %s27, %s30
      %p36 = scmp.eq.s32.totalorder %s17, 0
      %p37 = por %p35, %p36
      %p38 = scmp.ne.s32.totalorder %s27, %s30
      %p39 = scmp.eq.s32.totalorder %s22, 1
      %p40 = por %p38, %p39
      %p41 = scmp.ne.s32.totalorder %s30, %s31
      %p42 = scmp.eq.s32.totalorder %s22, 0
      %p43 = por %p41, %p42
      %p44 = scmp.ne.s32.totalorder %s30, %s31
      %p45 = scmp.eq.s32.totalorder %s23, 1
      %p46 = por %p44, %p45
      %p48 = scmp.ne.s32.totalorder %s31, %s47
      %p49 = scmp.eq.s32.totalorder %s23, 0
      %p50 = por %p48, %p49
      %s52 = sadd.s32 %s51, 1
      %p55 = scmp.eq.s32.totalorder %s17, 1
      %p56 = scmp.ne.s32.totalorder %s51, %s53
      %p57 = scmp.eq.s32.totalorder %s17, 0
      %p58 = por %p56, %p57
      %p59 = scmp.ne.s32.totalorder %s51, %s53
      %p60 = scmp.eq.s32.totalorder %s22, 1
      %p61 = por %p59, %p60
      %p62 = scmp.ne.s32.totalorder %s53, %s54
      %p63 = scmp.eq.s32.totalorder %s22, 0
      %p64 = por %p62, %p63
      %p65 = scmp.ne.s32.totalorder %s53, %s54
      %p66 = scmp.eq.s32.totalorder %s23, 1
      %p67 = por %p65, %p66
      %p69 = scmp.ne.s32.totalorder %s54, %s68
      %p70 = scmp.eq.s32.totalorder %s23, 0
      %p71 = por %p69, %p70
      %s73 = sadd.s32 %s72, 1
      %p76 = scmp.eq.s32.totalorder %s17, 1
      %p77 = scmp.ne.s32.totalorder %s72, %s74
      %p78 = scmp.eq.s32.totalorder %s17, 0
      %p79 = por %p77, %p78
      %p80 = scmp.ne.s32.totalorder %s72, %s74
      %p81 = scmp.eq.s32.totalorder %s22, 1
      %p82 = por %p80, %p81
      %p83 = scmp.ne.s32.totalorder %s74, %s75
      %p84 = scmp.eq.s32.totalorder %s22, 0
      %p85 = por %p83, %p84
      %p86 = scmp.ne.s32.totalorder %s74, %s75
      %p87 = scmp.eq.s32.totalorder %s23, 1
      %p88 = por %p86, %p87
      %p90 = scmp.ne.s32.totalorder %s75, %s89
      %p91 = scmp.eq.s32.totalorder %s23, 0
      %p92 = por %p90, %p91
      %s94 = sadd.s32 %s93, 1
      %p97 = scmp.eq.s32.totalorder %s17, 1
      %p98 = scmp.ne.s32.totalorder %s93, %s95
      %p99 = scmp.eq.s32.totalorder %s17, 0
      %p100 = por %p98, %p99
      %p101 = scmp.ne.s32.totalorder %s93, %s95
      %p102 = scmp.eq.s32.totalorder %s22, 1
      %p103 = por %p101, %p102
      %p104 = scmp.ne.s32.totalorder %s95, %s96
      %p105 = scmp.eq.s32.totalorder %s22, 0
      %p106 = por %p104, %p105
      %p107 = scmp.ne.s32.totalorder %s95, %s96
      %p108 = scmp.eq.s32.totalorder %s23, 1
      %p109 = por %p107, %p108
      %p111 = scmp.ne.s32.totalorder %s96, %s110
      %p112 = scmp.eq.s32.totalorder %s23, 0
      %p113 = por %p111, %p112
      %s115 = sadd.s32 %s114, 1
      %p118 = scmp.eq.s32.totalorder %s17, 1
      %p119 = scmp.ne.s32.totalorder %s114, %s116
      %p120 = scmp.eq.s32.totalorder %s17, 0
      %p121 = por %p119, %p120
      %p122 = scmp.ne.s32.totalorder %s114, %s116
      %p123 = scmp.eq.s32.totalorder %s22, 1
      %p124 = por %p122, %p123
      %p125 = scmp.ne.s32.totalorder %s116, %s117
      %p126 = scmp.eq.s32.totalorder %s22, 0
      %p127 = por %p125, %p126
      %p128 = scmp.ne.s32.totalorder %s116, %s117
      %p129 = scmp.eq.s32.totalorder %s23, 1
      %p130 = por %p128, %p129
      %p132 = scmp.ne.s32.totalorder %s117, %s131
      %p133 = scmp.eq.s32.totalorder %s23, 0
      %p134 = por %p132, %p133
      %s135 = ssub.s32 %s17, %s24
      %p136 = scmp.eq.s32.totalorder %s135, 0
      %s138 = sadd.s32 %s137, 1
      %s139 = scalar_select %p136, %s137, %s138
      %p142 = pneg %p136
      %p143 = scmp.eq.s32.totalorder %s17, 1
      %p144 = por %p142, %p143
      %p145 = scmp.ne.s32.totalorder %s137, %s140
      %p146 = scmp.eq.s32.totalorder %s17, 0
      %p147 = por %p145, %p146
      %p148 = scmp.ne.s32.totalorder %s137, %s140
      %p149 = scmp.eq.s32.totalorder %s22, 1
      %p150 = por %p148, %p149
      %p151 = scmp.ne.s32.totalorder %s140, %s141
      %p152 = scmp.eq.s32.totalorder %s22, 0
      %p153 = por %p151, %p152
      %p154 = scmp.ne.s32.totalorder %s140, %s141
      %p155 = scmp.eq.s32.totalorder %s23, 1
      %p156 = por %p154, %p155
      %p158 = scmp.ne.s32.totalorder %s141, %s157
      %p159 = scmp.eq.s32.totalorder %s23, 0
      %p160 = por %p158, %p159
      %p161 = scmp.le.s32.totalorder 1, %s17
      %p162 = scmp.lt.s32.totalorder %s17, 3
      %p163 = pnand %p161, %p162
      %p164 = pneg %p163
      // Predicated region
      $region9: #{tpu_custom_call.1} parent=5 // pred_check
        _
      $region10: #{tpu_custom_call.1} parent=5 // pred_check_branch
        %166 = sbr.rel (%p163) target = $region12
      $region11: #{tpu_custom_call.1} parent=5 // pred_region
        %s167 = ssub.s32 %s17, 1
        // Predicated region
        $region13: #{tpu_custom_call.1} parent=11 // pred_check
          %p168 = pneg %p64
        $region14: #{tpu_custom_call.1} parent=11 // pred_check_branch
          %170 = sbr.rel (%p168) target = $region16
        $region15: #{tpu_custom_call.1} parent=11 // pred_region
          _
        $region16: #{tpu_custom_call.1} parent=11 // pred_fallthru
          _
        // Predicated region
        $region17: #{tpu_custom_call.1} parent=11 // pred_check
          %p171 = pneg %p85
        $region18: #{tpu_custom_call.1} parent=11 // pred_check_branch
          %173 = sbr.rel (%p171) target = $region20
        $region19: #{tpu_custom_call.1} parent=11 // pred_region
          _
        $region20: #{tpu_custom_call.1} parent=11 // pred_fallthru
          _
        // Predicated region
        $region21: #{tpu_custom_call.1} parent=11 // pred_check
          %p174 = pneg %p106
        $region22: #{tpu_custom_call.1} parent=11 // pred_check_branch
          %176 = sbr.rel (%p174) target = $region24
        $region23: #{tpu_custom_call.1} parent=11 // pred_region
          _
        $region24: #{tpu_custom_call.1} parent=11 // pred_fallthru
          _
        // Predicated region
        $region25: #{tpu_custom_call.1} parent=11 // pred_check
          %p177 = pneg %p127
        $region26: #{tpu_custom_call.1} parent=11 // pred_check_branch
          %179 = sbr.rel (%p177) target = $region28
        $region27: #{tpu_custom_call.1} parent=11 // pred_region
          _
        $region28: #{tpu_custom_call.1} parent=11 // pred_fallthru
          _
      $region12: #{tpu_custom_call.1} parent=5 // pred_fallthru
        _
      %p180 = scmp.lt.s32.totalorder %s17, 2
      // Predicated region
      $region29: #{tpu_custom_call.1} parent=5 // pred_check
        %p181 = pneg %p180
      $region30: #{tpu_custom_call.1} parent=5 // pred_check_branch
        %183 = sbr.rel (%p181) target = $region32
      $region31: #{tpu_custom_call.1} parent=5 // pred_region
        // Predicated region
        $region33: #{tpu_custom_call.1} parent=31 // pred_check
          %p184 = pneg %p37
        $region34: #{tpu_custom_call.1} parent=31 // pred_check_branch
          %186 = sbr.rel (%p184) target = $region36
        $region35: #{tpu_custom_call.1} parent=31 // pred_region
          %s187 = sand.u32 %s27, 1
          %s188 = scalar_lea.sflag [#allocation3], %s187
          %s189 = sand.u32 %s27, 1
          %s190 = smul.addr %s189, 16
          %s191 = scalar_lea.vmem [#allocation2], %s190
          %s193 = ssub.s32 256, 256
          %194 = vsyncadd %s188, %s193
          %s195 = smul.addr %s17, 2
          %s196 = smul.addr %s195, 128
          %s197 = scalar_lea.hbm %s0, %s196
          %s199 = sshll.u32 %s191, 4
          %s200 = int_to_ptr.vmem [resolvable:$true] %s199
          %202 = dma.hbm_to_vmem [thread:$0]  %s197, 256, %s200, %s188
        $region36: #{tpu_custom_call.1} parent=31 // pred_fallthru
          _
      $region32: #{tpu_custom_call.1} parent=5 // pred_fallthru
        _
      %p203 = scmp.le.s32.totalorder 1, %s17
      %p204 = scmp.lt.s32.totalorder %s17, 3
      %p205 = pnand %p203, %p204
      %p206 = pneg %p205
      // Predicated region
      $region37: #{tpu_custom_call.1} parent=5 // pred_check
        _
      $region38: #{tpu_custom_call.1} parent=5 // pred_check_branch
        %208 = sbr.rel (%p205) target = $region40
      $region39: #{tpu_custom_call.1} parent=5 // pred_region
        %s209 = ssub.s32 %s17, 1
        %s210 = sand.u32 %s30, 1
        %s211 = scalar_lea.sflag [#allocation3], %s210
        %s212 = sand.u32 %s30, 1
        %s213 = smul.addr %s212, 16
        %s214 = scalar_lea.vmem [#allocation2], %s213
        // Predicated region
        $region41: #{tpu_custom_call.1} parent=39 // pred_check
          %p215 = pneg %p43
        $region42: #{tpu_custom_call.1} parent=39 // pred_check_branch
          %217 = sbr.rel (%p215) target = $region44
        $region43: #{tpu_custom_call.1} parent=39 // pred_region
          %218 = dma.done %s211, 256
        $region44: #{tpu_custom_call.1} parent=39 // pred_fallthru
          _
        %s219 = sand.u32 %s30, 1
        %s220 = scalar_lea.sflag [#allocation3], %s219
        %s221 = sand.u32 %s30, 1
        %s222 = smul.addr %s221, 16
        %s223 = scalar_lea.vmem [#allocation2], %s222
        %p224 = pneg %p43
        %p225 = pneg %p40
        %p226 = pneg %p64
        %p227 = pneg %p61
        %p228 = pneg %p85
        %p229 = pneg %p82
        %p230 = pneg %p106
        %p231 = pneg %p103
        %p232 = pneg %p127
        %p233 = pneg %p124
        %p234 = pneg %p153
        %p235 = pneg %p150
        %s236 = sand.u32 %s140, 1
        %s237 = scalar_lea.sflag [#allocation4], %s236
        %s238 = sand.u32 %s140, 1
        %s239 = smul.addr %s238, 16
        %s240 = scalar_lea.vmem [#allocation5], %s239
        %v241 = vld [vmem:[%s214] sm:$0xff]
        %v242 = vld [vmem:[%s214 + $0x8] sm:$0xff]
        %v243 = vadd.f32 %v241, %v242
        %244 = vadd.xlane.f32.xlu0 %v243
        %v245 = vpop.xlane.xlu0 %244
        %v246 = vmul.f32 %v245, 0.00390625
        %v247 = vld [vmem:[%s1] sm:$0xff]
        %v248 = vld [vmem:[%s2] sm:$0x1]
        %v250 = vlaneseq
        %v251 = vand.u32 %v250, 127
        %v252 = vlaneseq
        %v253 = vshrl.u32 %v252, 7
        %v254 = vsub.s32 %v251, %v253
        %v255 = vrot.slane %v246, %v254
        %vm256 = vcmask 64512
        %v257 = vsel %vm256, %v255, 0
        %259 = vmatprep.subr.mxu0 0.0
        %260 = vmatpush1.msra.mxu0 0.0
        %261 = vmatprep.subr.mxu0 0.0
        %262 = vmatpush1.msra.mxu0 0.0
        %263 = vmatprep.subr.mxu0 0.0
        %264 = vmatpush1.msra.mxu0 0.0
        %265 = vmatprep.subr.mxu0 0.0
        %266 = vmatpush1.msra.mxu0 0.0
        %267 = vmatprep.subr.mxu0 0.0
        %268 = vmatpush1.msra.mxu0 0.0
        %269 = vmatprep.subr.mxu0 0.0
        %270 = vmatpush1.msra.mxu0 0.0
        %271 = vmatprep.subr.mxu0 0.0
        %272 = vmatpush1.msra.mxu0 0.0
        %273 = vmatprep.subr.mxu0 0.0
        %274 = vmatpush1.msra.mxu0 0.0
        %275 = vmatprep.subr.mxu0 0.0
        %276 = vmatpush1.msra.mxu0 0.0
        %277 = vmatprep.subr.mxu0 0.0
        %278 = vmatpush1.msra.mxu0 0.0
        %279 = vmatprep.subr.mxu0 0.0
        %280 = vmatpush1.msra.mxu0 0.0
        %281 = vmatprep.subr.mxu0 0.0
        %282 = vmatpush1.msra.mxu0 0.0
        %283 = vmatprep.subr.mxu0 0.0
        %284 = vmatpush1.msra.mxu0 0.0
        %285 = vmatprep.subr.mxu0 0.0
        %286 = vmatpush1.msra.mxu0 0.0
        %287 = vmatprep.subr.mxu0 0.0
        %288 = vmatpush1.msra.mxu0 0.0
        %289 = vmatprep.subr.mxu0 0.0
        %290 = vmatpush1.msra.mxu0 %v247
        %291 = vmatprep.subr.mxu0 0.0
        %292 = vmatpush2.msra.mxu0 0.0
        %293 = vmatprep.subr.mxu0 0.0
        %294 = vmatpush2.msra.mxu0 0.0
        %295 = vmatprep.subr.mxu0 0.0
        %296 = vmatpush2.msra.mxu0 0.0
        %297 = vmatprep.subr.mxu0 0.0
        %298 = vmatpush2.msra.mxu0 0.0
        %299 = vmatprep.subr.mxu0 0.0
        %300 = vmatpush2.msra.mxu0 0.0
        %301 = vmatprep.subr.mxu0 0.0
        %302 = vmatpush2.msra.mxu0 0.0
        %303 = vmatprep.subr.mxu0 0.0
        %304 = vmatpush2.msra.mxu0 0.0
        %305 = vmatprep.subr.mxu0 0.0
        %306 = vmatpush2.msra.mxu0 0.0
        %307 = vmatprep.subr.mxu0 0.0
        %308 = vmatpush2.msra.mxu0 0.0
        %309 = vmatprep.subr.mxu0 0.0
        %310 = vmatpush2.msra.mxu0 0.0
        %311 = vmatprep.subr.mxu0 0.0
        %312 = vmatpush2.msra.mxu0 0.0
        %313 = vmatprep.subr.mxu0 0.0
        %314 = vmatpush2.msra.mxu0 0.0
        %315 = vmatprep.subr.mxu0 0.0
        %316 = vmatpush2.msra.mxu0 0.0
        %317 = vmatprep.subr.mxu0 0.0
        %318 = vmatpush2.msra.mxu0 0.0
        %319 = vmatprep.subr.mxu0 0.0
        %320 = vmatpush2.msra.mxu0 0.0
        %321 = vmatprep.subr.mxu0 0.0
        %322 = vmatpush2.msra.mxu0 0.0
        %323 = vmatprep.mubr.f32.mxu0 0.0
        %324 = vmatmul.mubr.f32.gmra.mxu0 %v257
        %v325 = vpop.f32.mrf.mxu0
        %v326 = vadd.f32 %v248, %v325
        %v327 = vpop.f32.mrf.mxu0
        %328 = vdwg.mxu0
        %v329 = vmax.f32 %v326, 0.0
        %v330 = vld [vmem:[%s3] sm:$0x3]
        %v331 = vld [vmem:[%s4] sm:$0x1]
        %vm332 = vcmask 15360
        %v334 = vsel %vm332, %v329, 0
        %vm336 = vcmask 1041408
        %v338 = vsel %vm336, %v330, 0
        %340 = vmatprep.subr.mxu0 0.0
        %341 = vmatpush1.msra.mxu0 0.0
        %342 = vmatprep.subr.mxu0 0.0
        %343 = vmatpush1.msra.mxu0 0.0
        %344 = vmatprep.subr.mxu0 0.0
        %345 = vmatpush1.msra.mxu0 0.0
        %346 = vmatprep.subr.mxu0 0.0
        %347 = vmatpush1.msra.mxu0 0.0
        %348 = vmatprep.subr.mxu0 0.0
        %349 = vmatpush1.msra.mxu0 0.0
        %350 = vmatprep.subr.mxu0 0.0
        %351 = vmatpush1.msra.mxu0 0.0
        %352 = vmatprep.subr.mxu0 0.0
        %353 = vmatpush1.msra.mxu0 0.0
        %354 = vmatprep.subr.mxu0 0.0
        %355 = vmatpush1.msra.mxu0 0.0
        %356 = vmatprep.subr.mxu0 0.0
        %357 = vmatpush1.msra.mxu0 0.0
        %358 = vmatprep.subr.mxu0 0.0
        %359 = vmatpush1.msra.mxu0 0.0
        %360 = vmatprep.subr.mxu0 0.0
        %361 = vmatpush1.msra.mxu0 0.0
        %362 = vmatprep.subr.mxu0 0.0
        %363 = vmatpush1.msra.mxu0 0.0
        %364 = vmatprep.subr.mxu0 0.0
        %365 = vmatpush1.msra.mxu0 0.0
        %366 = vmatprep.subr.mxu0 0.0
        %367 = vmatpush1.msra.mxu0 0.0
        %368 = vmatprep.subr.mxu0 0.0
        %369 = vmatpush1.msra.mxu0 0.0
        %370 = vmatprep.subr.mxu0 0.0
        %371 = vmatpush1.msra.mxu0 %v338
        %372 = vmatprep.subr.mxu0 0.0
        %373 = vmatpush2.msra.mxu0 0.0
        %374 = vmatprep.subr.mxu0 0.0
        %375 = vmatpush2.msra.mxu0 0.0
        %376 = vmatprep.subr.mxu0 0.0
        %377 = vmatpush2.msra.mxu0 0.0
        %378 = vmatprep.subr.mxu0 0.0
        %379 = vmatpush2.msra.mxu0 0.0
        %380 = vmatprep.subr.mxu0 0.0
        %381 = vmatpush2.msra.mxu0 0.0
        %382 = vmatprep.subr.mxu0 0.0
        %383 = vmatpush2.msra.mxu0 0.0
        %384 = vmatprep.subr.mxu0 0.0
        %385 = vmatpush2.msra.mxu0 0.0
        %386 = vmatprep.subr.mxu0 0.0
        %387 = vmatpush2.msra.mxu0 0.0
        %388 = vmatprep.subr.mxu0 0.0
        %389 = vmatpush2.msra.mxu0 0.0
        %390 = vmatprep.subr.mxu0 0.0
        %391 = vmatpush2.msra.mxu0 0.0
        %392 = vmatprep.subr.mxu0 0.0
        %393 = vmatpush2.msra.mxu0 0.0
        %394 = vmatprep.subr.mxu0 0.0
        %395 = vmatpush2.msra.mxu0 0.0
        %396 = vmatprep.subr.mxu0 0.0
        %397 = vmatpush2.msra.mxu0 0.0
        %398 = vmatprep.subr.mxu0 0.0
        %399 = vmatpush2.msra.mxu0 0.0
        %400 = vmatprep.subr.mxu0 0.0
        %401 = vmatpush2.msra.mxu0 0.0
        %402 = vmatprep.subr.mxu0 0.0
        %403 = vmatpush2.msra.mxu0 0.0
        %404 = vmatprep.mubr.f32.mxu0 0.0
        %405 = vmatmul.mubr.f32.gmra.mxu0 %v334
        %v406 = vpop.f32.mrf.mxu0
        %v407 = vadd.f32 %v331, %v406
        %v408 = vpop.f32.mrf.mxu0
        %409 = vdwg.mxu0
        %v410 = vadd.f32 %v407, 3.0
        %v411 = vmax.f32 %v410, 0.0
        %v412 = vmin.f32 %v411, 6.0
        %v413 = vmul.f32 %v412, 0.16666667
        %v414 = vsub.f32 %v413, 0.5
        %v415 = vmul.f32 %v414, 2.0
        %v416 = vadd.f32 %v415, 1.0
        %v417 = vadd.f32 %v414, 0.0
        %v418 = vadd.f32 %v415, 0.0
        %v419 = vlaneseq
        %v420 = vshrl.u32 %v419, 7
        %v421 = vsub.s32 0, %v420
        %v422 = vrot.slane %v416, %v421
        %424 = vbcast.lane.b32.xlu0 %v422, 256
        %v425 = vpop.permute.xlu0 %424
        %v426 = vmul.f32 %v241, %v425
        %v427 = vmul.f32 %v242, %v425
        %v428 = vlaneseq
        %v429 = vshrl.u32 %v428, 7
        %v430 = vsub.s32 0, %v429
        %v431 = vrot.slane %v417, %v430
        %s433 = sor.u32 256, 8
        %434 = vbcast.lane.b32.xlu0 %v431, %s433
        %v435 = vpop.permute.xlu0 %434
        %v436 = vadd.f32 %v426, %v435
        %v437 = vadd.f32 %v427, %v435
        %v438 = vlaneseq
        %v439 = vshrl.u32 %v438, 7
        %v440 = vsub.s32 0, %v439
        %v441 = vrot.slane %v418, %v440
        %s443 = sor.u32 256, 16
        %444 = vbcast.lane.b32.xlu0 %v441, %s443
        %v445 = vpop.permute.xlu0 %444
        %v446 = vmul.f32 %v241, %v445
        %v447 = vmul.f32 %v242, %v445
        %s449 = sor.u32 256, 24
        %450 = vbcast.lane.b32.xlu0 %v431, %s449
        %v451 = vpop.permute.xlu0 %450
        %v452 = vadd.f32 %v446, %v451
        %v453 = vadd.f32 %v447, %v451
        %v454 = vmax.f32 %v436, %v452
        %v455 = vmax.f32 %v437, %v453
        %456 = vst [vmem:[%s240] sm:$0xff] %v454
        %457 = vst [vmem:[%s240 + $0x8] sm:$0xff] %v455
        %s458 = sand.u32 %s140, 1
        %s459 = scalar_lea.sflag [#allocation4], %s458
        %s460 = sand.u32 %s140, 1
        %s461 = smul.addr %s460, 16
        %s462 = scalar_lea.vmem [#allocation5], %s461
        // Predicated region
        $region45: #{tpu_custom_call.1} parent=39 // pred_check
          %p463 = pneg %p150
        $region46: #{tpu_custom_call.1} parent=39 // pred_check_branch
          %465 = sbr.rel (%p463) target = $region48
        $region47: #{tpu_custom_call.1} parent=39 // pred_region
          %s467 = ssub.s32 256, 256
          %468 = vsyncadd %s459, %s467
          %s469 = smul.addr %s22, 2
          %s470 = smul.addr %s469, 128
          %s471 = scalar_lea.hbm %s5, %s470
          %s473 = sshll.u32 %s462, 4
          %s474 = int_to_ptr.vmem [resolvable:$true] %s473
          %476 = dma.vmem_to_hbm [thread:$0]  %s474, 256, %s471, %s459
        $region48: #{tpu_custom_call.1} parent=39 // pred_fallthru
          _
      $region40: #{tpu_custom_call.1} parent=5 // pred_fallthru
        _
      %p477 = scmp.le.s32.totalorder 2, %s17
      // Predicated region
      $region49: #{tpu_custom_call.1} parent=5 // pred_check
        %p478 = pneg %p477
      $region50: #{tpu_custom_call.1} parent=5 // pred_check_branch
        %480 = sbr.rel (%p478) target = $region52
      $region51: #{tpu_custom_call.1} parent=5 // pred_region
        %s481 = ssub.s32 %s17, 2
        // Predicated region
        $region53: #{tpu_custom_call.1} parent=51 // pred_check
          %p482 = pneg %p156
        $region54: #{tpu_custom_call.1} parent=51 // pred_check_branch
          %484 = sbr.rel (%p482) target = $region56
        $region55: #{tpu_custom_call.1} parent=51 // pred_region
          %s485 = sand.u32 %s141, 1
          %s486 = scalar_lea.sflag [#allocation4], %s485
          %s487 = sand.u32 %s141, 1
          %s488 = smul.addr %s487, 16
          %s489 = scalar_lea.vmem [#allocation5], %s488
          %490 = dma.done %s486, 256
        $region56: #{tpu_custom_call.1} parent=51 // pred_fallthru
          _
      $region52: #{tpu_custom_call.1} parent=5 // pred_fallthru
        _
    $region6: #{tpu_custom_call.1} parent=1 // loop_footer
      %s21 = sadd.s32 1, %s17
    $region7: #{tpu_custom_call.1} parent=1 // loop_footer_branch
      %16 = sbr.rel target = $region3
    $region8: #{tpu_custom_call.1} parent=1 // loop_exit
      _
    %491 = vsyncpa [#allocation3], 1
    %s492 = scalar_lea.sflag [#allocation3], 1
    %493 = vsyncpa %s492, 1
    %494 = vsyncpa [#allocation4], 1
    %s495 = scalar_lea.sflag [#allocation4], 1
    %496 = vsyncpa %s495, 1

</llo_original>
